<compile_context>
chip_gen: v5e
topology: v5e:2x2
jax: 0.10.0
libtpu: 0.0.40
codegen_flags: <defaults>
</compile_context>

<pallas_src>
import functools
import math

import jax
import jax.numpy as jnp
from jax import lax
from jax.experimental import pallas as pl
from jax.experimental.pallas import tpu as pltpu


def _conv_kernel(x_ref, w_ref, b_ref, o_ref, xp_ref, col_ref, *,
                 nb, kh_sz, kw_sz, sh, sw, oh, ow, cin, h, w_in,
                 pad_left, pad_right, l, l_pad):
    """One batch block per grid step.

    x_ref  : (NB, Cin, H, W)      unpadded NCHW input block (input dtype)
    w_ref  : (Cout, K)            weight, tap-major / Cin-minor (MXU dtype)
    b_ref  : (Cout, 1)            f32 bias
    o_ref  : (NB, Cout, L_pad)    lane-dense, Cout-major (== NCHW after reshape)
    xp_ref : (NB, Cin, H, WP)     VMEM scratch: width-padded input (MXU dtype)
    col_ref: (K, NB * L_pad)      VMEM scratch: im2col matrix (MXU dtype)
    """
    k_total = kh_sz * kw_sz * cin

    # 1) Pad + cast the input block once, entirely inside VMEM (no HBM pad pass).
    xp_ref[:, :, :, pad_left:pad_left + w_in] = x_ref[...].astype(xp_ref.dtype)
    if pad_left > 0:
        xp_ref[:, :, :, :pad_left] = jnp.zeros((nb, cin, h, pad_left),
                                               xp_ref.dtype)
    if pad_right > 0:
        xp_ref[:, :, :, pad_left + w_in:] = jnp.zeros((nb, cin, h, pad_right),
                                                      xp_ref.dtype)

    # 2) im2col: each tap slab goes straight into `col` at its K offset
    #    (no concatenate / no extra copy); batch folded into the lane axis.
    for n in range(nb):
        base = n * l_pad
        if l_pad != l:   # keep the padded output lanes clean
            col_ref[:, base + l:base + l_pad] = jnp.zeros(
                (k_total, l_pad - l), col_ref.dtype)
        for kh in range(kh_sz):
            for kw in range(kw_sz):
                k_off = (kh * kw_sz + kw) * cin
                if sh == 1 and sw == 1:
                    patch = xp_ref[n, :, kh:kh + oh, kw:kw + ow]
                else:
                    # TODO(synk): SW > 1 strides the lane axis (slow XLU path);
                    # fine/unused for FBtCNN's stride-1 width convolutions.
                    patch = xp_ref[n, :, pl.ds(kh, oh, sh), pl.ds(kw, ow, sw)]
                col_ref[k_off:k_off + cin, base:base + l] = patch.reshape(cin, l)

    # 3) One big-K / big-N MXU matmul, f32 accumulate + f32 bias add.
    acc = jnp.dot(w_ref[...], col_ref[...],
                  preferred_element_type=jnp.float32)       # (Cout, NB*L_pad)
    acc = acc + b_ref[...]

    # 4) Lane-dense stores: one 128-aligned lane slab per batch element.
    for n in range(nb):
        o_ref[n] = acc[:, n * l_pad:(n + 1) * l_pad].astype(o_ref.dtype)


def _pick_batch_block(n, per_item_bytes, budget_bytes, nb_cap):
    """Largest batch block that divides N, fits the VMEM budget and the unroll
    cap, preferring an even grid extent >= 4 (keeps both v7x TCs pipelined),
    then any grid extent >= 2, then anything that fits."""
    divisors = [d for d in range(1, n + 1) if n % d == 0]
    fits = [d for d in divisors
            if d <= nb_cap and d * per_item_bytes <= budget_bytes] or [1]

    def grid(d):
        return n // d

    tier1 = [d for d in fits if grid(d) >= 4 and grid(d) % 2 == 0]
    tier2 = [d for d in fits if grid(d) >= 2]
    for tier in (tier1, tier2, fits):
        if tier:
            return max(tier)
    return 1


def same_pad_conv2d(x_nchw, weight_oihw, bias, stride, *, mxu_dtype=jnp.bfloat16):
    """Matches SamePadConv2d.forward: ZeroPad2d on width only, then Conv2d (VALID)."""
    N, Cin, H, W = x_nchw.shape
    Cout, _, KH, KW = weight_oihw.shape
    SH, SW = stride

    # Same width-padding arithmetic as the PyTorch module __init__.
    pad_len = (KW // SW - 1) * SW
    # TODO(synk): nn.ZeroPad2d with a negative pad (KW < SW) crops; not supported.
    assert pad_len >= 0, "KW < SW implies negative 'same' padding (cropping)"
    pad_left = pad_len // 2
    pad_right = pad_len - pad_left
    WP = W + pad_len
    assert H >= KH and WP >= KW, "kernel larger than (padded) input"

    OH = (H - KH) // SH + 1
    OW = (WP - KW) // SW + 1
    L = OH * OW
    L_pad = ((L + 127) // 128) * 128          # lane-dense output stores
    K = KH * KW * Cin

    mdt = x_nchw.dtype if mxu_dtype is None else mxu_dtype
    # Weight -> (Cout, KH*KW*Cin), tap-major / Cin-minor to match im2col order.
    w = jnp.transpose(weight_oihw, (0, 2, 3, 1)).reshape(Cout, K).astype(mdt)
    b = bias.reshape(Cout, 1).astype(jnp.float32)

    in_item = jnp.dtype(x_nchw.dtype).itemsize
    out_item = jnp.dtype(x_nchw.dtype).itemsize
    mx_item = jnp.dtype(mdt).itemsize

    # Per-batch-element VMEM cost: double-buffered in/out pipeline blocks plus
    # the single-buffered padded-input & im2col scratch and the f32 accumulator
    # (the previous version under-counted by roughly KH*KW x).
    per_item = (2 * Cin * H * W * in_item        # input block  (x2 buffers)
                + 2 * Cout * L_pad * out_item    # output block (x2 buffers)
                + Cin * H * WP * mx_item         # xp scratch
                + K * L_pad * mx_item            # col scratch
                + Cout * L_pad * 4)              # f32 matmul accumulator

    # Generation-aware budgets: v7x has 64 MiB VMEM / 2 TCs (stay small, keep
    # >= 4 grid steps); v5e/v6e have 128 MiB (bigger blocks ~ free bandwidth).
    try:
        vmem_cap = int(pltpu.get_tpu_info().vmem_capacity_bytes)
    except Exception:
        vmem_cap = 64 << 20
    small_vmem = vmem_cap <= (64 << 20)
    budget = (8 << 20) if small_vmem else (28 << 20)
    limit_cap = (48 << 20) if small_vmem else (100 << 20)

    nb_cap = max(1, min(16, 128 // max(1, KH * KW)))   # bound in-kernel unroll
    NB = _pick_batch_block(N, per_item, budget, nb_cap)
    grid = (N // NB,)

    need = NB * per_item + 2 * Cout * (K * mx_item + 4) + (8 << 20)
    vmem_limit = int(min(limit_cap, max(16 << 20, need)))

    kernel = functools.partial(
        _conv_kernel, nb=NB, kh_sz=KH, kw_sz=KW, sh=SH, sw=SW, oh=OH, ow=OW,
        cin=Cin, h=H, w_in=W, pad_left=pad_left, pad_right=pad_right,
        l=L, l_pad=L_pad)

    out = pl.pallas_call(
        kernel,
        out_shape=jax.ShapeDtypeStruct((N, Cout, L_pad), x_nchw.dtype),
        grid=grid,
        in_specs=[
            pl.BlockSpec((NB, Cin, H, W), lambda i: (i, 0, 0, 0)),
            pl.BlockSpec((Cout, K), lambda i: (0, 0)),
            pl.BlockSpec((Cout, 1), lambda i: (0, 0)),
        ],
        out_specs=pl.BlockSpec((NB, Cout, L_pad), lambda i: (i, 0, 0)),
        scratch_shapes=[
            pltpu.VMEM((NB, Cin, H, WP), mdt),        # width-padded input
            pltpu.VMEM((K, NB * L_pad), mdt),         # im2col matrix
        ],
        compiler_params=pltpu.CompilerParams(
            dimension_semantics=("parallel",),
            vmem_limit_bytes=vmem_limit),
    )(x_nchw, w, b)

    # Layout plumbing only: drop the lane padding (no-op when L % 128 == 0).
    if L_pad != L:
        out = out[:, :, :L]
    return out.reshape(N, Cout, OH, OW)


if __name__ == "__main__":
    key = jax.random.PRNGKey(0)
    kx, kwt, kb = jax.random.split(key, 3)

    # Small shapes consistent with the module (NCHW input).
    N, Cin, H, W = 2, 4, 16, 16
    Cout, KH, KW = 8, 1, 4
    stride = (1, 1)

    x = jax.random.normal(kx, (N, Cin, H, W), dtype=jnp.float32)

    # Deterministic Conv2d-style init (uniform in +/- 1/sqrt(fan_in)).
    fan_in = Cin * KH * KW
    bound = 1.0 / math.sqrt(fan_in)
    weight = jax.random.uniform(kwt, (Cout, Cin, KH, KW), jnp.float32,
                                -bound, bound)
    bias = jax.random.uniform(kb, (Cout,), jnp.float32, -bound, bound)

    # Pure-JAX reference (same pad-then-VALID-conv semantics as the module).
    pad_len = (KW // stride[1] - 1) * stride[1]
    padl, padr = pad_len // 2, pad_len - pad_len // 2
    x_pad = jnp.pad(x, ((0, 0), (0, 0), (0, 0), (padl, padr)))
    ref = lax.conv_general_dilated(
        x_pad, weight, window_strides=stride, padding="VALID",
        dimension_numbers=("NCHW", "OIHW", "NCHW"),
    ) + bias[None, :, None, None]

    # f32 MXU path: validates im2col / in-kernel padding indexing exactly.
    out_f32 = jax.block_until_ready(
        same_pad_conv2d(x, weight, bias, stride, mxu_dtype=None))
    assert out_f32.shape == ref.shape, (out_f32.shape, ref.shape)
    assert jnp.allclose(out_f32, ref, atol=1e-4, rtol=1e-4)

    # Default bf16-MXU-operand path (f32 accumulate): looser tolerance.
    out_bf16 = jax.block_until_ready(same_pad_conv2d(x, weight, bias, stride))
    assert out_bf16.shape == ref.shape, (out_bf16.shape, ref.shape)
    assert jnp.allclose(out_bf16, ref, atol=1e-1, rtol=1e-2)

    print("KERNEL_OK")
</pallas_src>

<mosaic_0001>
module attributes {stable_mosaic.version = 11 : i64} {
  func.func @_conv_kernel(%arg0: i32, %arg1: memref<1x4x16x16xf32, #tpu.memory_space<vmem>>, %arg2: memref<8x16xf32, #tpu.memory_space<vmem>>, %arg3: memref<8x1xf32, #tpu.memory_space<vmem>>, %arg4: memref<1x8x256xf32, #tpu.memory_space<vmem>>, %arg5: memref<1x4x16x19xf32, #tpu.memory_space<vmem>>, %arg6: memref<16x256xf32, #tpu.memory_space<vmem>>) attributes {dimension_semantics = [#tpu.dimension_semantics<parallel>], iteration_bounds = array<i64: 2>, scalar_prefetch = 0 : i64, scratch_operands = 2 : i64, tpu.core_type = #tpu.core_type<tc>, window_params = [{transform_indices = @transform_0, window_bounds = array<i64: 1, 4, 16, 16>}, {pipeline_mode = #tpu.pipeline_mode<synchronous>, transform_indices = @transform_1, window_bounds = array<i64: 8, 16>}, {pipeline_mode = #tpu.pipeline_mode<synchronous>, transform_indices = @transform_2, window_bounds = array<i64: 8, 1>}, {transform_indices = @transform_3, window_bounds = array<i64: 1, 8, 256>}]} {
    %c0 = arith.constant 0 : index
    %c0_0 = arith.constant 0 : index
    %c0_1 = arith.constant 0 : index
    %c0_2 = arith.constant 0 : index
    %0 = vector.load %arg1[%c0, %c0_0, %c0_1, %c0_2] : memref<1x4x16x16xf32, #tpu.memory_space<vmem>>, vector<1x4x16x16xf32>
    %c0_3 = arith.constant 0 : index
    %c0_4 = arith.constant 0 : index
    %c0_5 = arith.constant 0 : index
    %c1 = arith.constant 1 : index
    %1 = vector.load %arg5[%c0_3, %c0_4, %c0_5, %c1] : memref<1x4x16x19xf32, #tpu.memory_space<vmem>>, vector<1x4x16x16xf32>
    tpu.vector_store %arg5[%c0_3, %c0_4, %c0_5, %c1], %0 {strides = array<i32>} : memref<1x4x16x19xf32, #tpu.memory_space<vmem>>, vector<1x4x16x16xf32>,
    %cst = arith.constant 0.000000e+00 : f32
    %2 = vector.broadcast %cst : f32 to vector<1x4x16x1xf32>
    %c0_6 = arith.constant 0 : index
    %c0_7 = arith.constant 0 : index
    %c0_8 = arith.constant 0 : index
    %c0_9 = arith.constant 0 : index
    %3 = vector.load %arg5[%c0_6, %c0_7, %c0_8, %c0_9] : memref<1x4x16x19xf32, #tpu.memory_space<vmem>>, vector<1x4x16x1xf32>
    tpu.vector_store %arg5[%c0_6, %c0_7, %c0_8, %c0_9], %2 {strides = array<i32>} : memref<1x4x16x19xf32, #tpu.memory_space<vmem>>, vector<1x4x16x1xf32>,
    %cst_10 = arith.constant 0.000000e+00 : f32
    %4 = vector.broadcast %cst_10 : f32 to vector<1x4x16x2xf32>
    %c0_11 = arith.constant 0 : index
    %c0_12 = arith.constant 0 : index
    %c0_13 = arith.constant 0 : index
    %c17 = arith.constant 17 : index
    %5 = vector.load %arg5[%c0_11, %c0_12, %c0_13, %c17] : memref<1x4x16x19xf32, #tpu.memory_space<vmem>>, vector<1x4x16x2xf32>
    tpu.vector_store %arg5[%c0_11, %c0_12, %c0_13, %c17], %4 {strides = array<i32>} : memref<1x4x16x19xf32, #tpu.memory_space<vmem>>, vector<1x4x16x2xf32>,
    %c0_14 = arith.constant 0 : index
    %c0_15 = arith.constant 0 : index
    %c0_16 = arith.constant 0 : index
    %c0_17 = arith.constant 0 : index
    %6 = vector.load %arg5[%c0_14, %c0_15, %c0_16, %c0_17] : memref<1x4x16x19xf32, #tpu.memory_space<vmem>>, vector<1x4x16x16xf32>
    %7 = vector.shape_cast %6 : vector<1x4x16x16xf32> to vector<4x16x16xf32>
    %8 = vector.shape_cast %7 : vector<4x16x16xf32> to vector<4x256xf32>
    %c0_18 = arith.constant 0 : index
    %c0_19 = arith.constant 0 : index
    %9 = vector.load %arg6[%c0_18, %c0_19] : memref<16x256xf32, #tpu.memory_space<vmem>>, vector<4x256xf32>
    tpu.vector_store %arg6[%c0_18, %c0_19], %8 {strides = array<i32>} : memref<16x256xf32, #tpu.memory_space<vmem>>, vector<4x256xf32>,
    %c0_20 = arith.constant 0 : index
    %c0_21 = arith.constant 0 : index
    %c0_22 = arith.constant 0 : index
    %c1_23 = arith.constant 1 : index
    %10 = vector.load %arg5[%c0_20, %c0_21, %c0_22, %c1_23] : memref<1x4x16x19xf32, #tpu.memory_space<vmem>>, vector<1x4x16x16xf32>
    %11 = vector.shape_cast %10 : vector<1x4x16x16xf32> to vector<4x16x16xf32>
    %12 = vector.shape_cast %11 : vector<4x16x16xf32> to vector<4x256xf32>
    %c4 = arith.constant 4 : index
    %c0_24 = arith.constant 0 : index
    %13 = vector.load %arg6[%c4, %c0_24] : memref<16x256xf32, #tpu.memory_space<vmem>>, vector<4x256xf32>
    tpu.vector_store %arg6[%c4, %c0_24], %12 {strides = array<i32>} : memref<16x256xf32, #tpu.memory_space<vmem>>, vector<4x256xf32>,
    %c0_25 = arith.constant 0 : index
    %c0_26 = arith.constant 0 : index
    %c0_27 = arith.constant 0 : index
    %c2 = arith.constant 2 : index
    %14 = vector.load %arg5[%c0_25, %c0_26, %c0_27, %c2] : memref<1x4x16x19xf32, #tpu.memory_space<vmem>>, vector<1x4x16x16xf32>
    %15 = vector.shape_cast %14 : vector<1x4x16x16xf32> to vector<4x16x16xf32>
    %16 = vector.shape_cast %15 : vector<4x16x16xf32> to vector<4x256xf32>
    %c8 = arith.constant 8 : index
    %c0_28 = arith.constant 0 : index
    %17 = vector.load %arg6[%c8, %c0_28] : memref<16x256xf32, #tpu.memory_space<vmem>>, vector<4x256xf32>
    tpu.vector_store %arg6[%c8, %c0_28], %16 {strides = array<i32>} : memref<16x256xf32, #tpu.memory_space<vmem>>, vector<4x256xf32>,
    %c0_29 = arith.constant 0 : index
    %c0_30 = arith.constant 0 : index
    %c0_31 = arith.constant 0 : index
    %c3 = arith.constant 3 : index
    %18 = vector.load %arg5[%c0_29, %c0_30, %c0_31, %c3] : memref<1x4x16x19xf32, #tpu.memory_space<vmem>>, vector<1x4x16x16xf32>
    %19 = vector.shape_cast %18 : vector<1x4x16x16xf32> to vector<4x16x16xf32>
    %20 = vector.shape_cast %19 : vector<4x16x16xf32> to vector<4x256xf32>
    %c12 = arith.constant 12 : index
    %c0_32 = arith.constant 0 : index
    %21 = vector.load %arg6[%c12, %c0_32] : memref<16x256xf32, #tpu.memory_space<vmem>>, vector<4x256xf32>
    tpu.vector_store %arg6[%c12, %c0_32], %20 {strides = array<i32>} : memref<16x256xf32, #tpu.memory_space<vmem>>, vector<4x256xf32>,
    %c0_33 = arith.constant 0 : index
    %c0_34 = arith.constant 0 : index
    %22 = vector.load %arg2[%c0_33, %c0_34] : memref<8x16xf32, #tpu.memory_space<vmem>>, vector<8x16xf32>
    %c0_35 = arith.constant 0 : index
    %c0_36 = arith.constant 0 : index
    %23 = vector.load %arg6[%c0_35, %c0_36] : memref<16x256xf32, #tpu.memory_space<vmem>>, vector<16x256xf32>
    %cst_37 = arith.constant dense<0.000000e+00> : vector<8x256xf32>
    %24 = tpu.matmul %22, %23, %cst_37 {dimension_numbers = #tpu.dot_dimension_numbers<[1], [0], [0], [1], [0, 0, 1, 1], [], []>} : vector<8x16xf32>, vector<16x256xf32>, vector<8x256xf32> -> vector<8x256xf32>
    %c0_38 = arith.constant 0 : index
    %c0_39 = arith.constant 0 : index
    %25 = vector.load %arg3[%c0_38, %c0_39] : memref<8x1xf32, #tpu.memory_space<vmem>>, vector<8x1xf32>
    %26 = vector.broadcast %25 : vector<8x1xf32> to vector<8x256xf32>
    %27 = arith.addf %24, %26 : vector<8x256xf32>
    %c0_40 = arith.constant 0 : index
    %c0_41 = arith.constant 0 : index
    %c0_42 = arith.constant 0 : index
    %28 = vector.load %arg4[%c0_40, %c0_41, %c0_42] : memref<1x8x256xf32, #tpu.memory_space<vmem>>, vector<1x8x256xf32>
    %29 = vector.shape_cast %28 : vector<1x8x256xf32> to vector<8x256xf32>
    %30 = vector.shape_cast %27 : vector<8x256xf32> to vector<1x8x256xf32>
    tpu.vector_store %arg4[%c0_40, %c0_41, %c0_42], %30 {strides = array<i32>} : memref<1x8x256xf32, #tpu.memory_space<vmem>>, vector<1x8x256xf32>,
    return
  }
  func.func @transform_0(%arg0: i32) -> (i32, i32, i32, i32) {
    %c0_i32 = arith.constant 0 : i32
    %c0_i32_0 = arith.constant 0 : i32
    %c0_i32_1 = arith.constant 0 : i32
    %c0_i32_2 = arith.constant 0 : i32
    return %arg0, %c0_i32, %c0_i32_0, %c0_i32_1 : i32, i32, i32, i32
  }
  func.func @transform_1(%arg0: i32) -> (i32, i32) {
    %c0_i32 = arith.constant 0 : i32
    %c0_i32_0 = arith.constant 0 : i32
    %c0_i32_1 = arith.constant 0 : i32
    return %c0_i32, %c0_i32_0 : i32, i32
  }
  func.func @transform_2(%arg0: i32) -> (i32, i32) {
    %c0_i32 = arith.constant 0 : i32
    %c0_i32_0 = arith.constant 0 : i32
    %c0_i32_1 = arith.constant 0 : i32
    return %c0_i32, %c0_i32_0 : i32, i32
  }
  func.func @transform_3(%arg0: i32) -> (i32, i32, i32) {
    %c0_i32 = arith.constant 0 : i32
    %c0_i32_0 = arith.constant 0 : i32
    %c0_i32_1 = arith.constant 0 : i32
    return %arg0, %c0_i32, %c0_i32_0 : i32, i32, i32
  }
}

</mosaic_0001>

<llo_original>
// kernel: tpu_custom_call.1
$region0: #{tpu_custom_call.1}
  #allocation0 [shape = 'u32[]', space=smem, size = 0x4, offset = 0x4, fixed_abs, tag = 'smem constant byte address 0x4 - core index']
  #allocation1 [shape = 'u32[72,128]{1,0:T(1,128)}', space=vmem, size = 0x9000, scoped, tag = 'internal scratch']
  #allocation2 [shape = 'f32[1,4,16,19]{3,2,1,0:T(8,128)}', space=vmem, size = 0x8000, scoped, tag = 'scratch operand']
  #allocation3 [shape = 'f32[16,256]{1,0:T(8,128)}', space=vmem, size = 0x4000, scoped, tag = 'scratch operand']
  %s0 = inlined_call_operand.hbm [shape: f32[2,4,16,16], index: 0, kind: input, shape index: {}]
  %s1 = inlined_call_operand.vmem [shape: f32[8,16], index: 1, kind: input, shape index: {}]
  %s2 = inlined_call_operand.vmem [shape: f32[8,1], index: 2, kind: input, shape index: {}]
  %s3 = inlined_call_operand.hbm [shape: f32[2,8,256], index: 3, kind: output, shape index: {}]
  %s4 = sld [smem:[#allocation0]]
  $region49: #{tpu_custom_call.1} parent=0
    _
  %s6 = ssub.s32 1, %s4
  %s7 = scalar_select 0, %s6, %s4
  $region1: #{tpu_custom_call.1} parent=0
    #allocation4 [shape = 'u8[65536]{0}', space=vmem, size = 0x10000, scoped, tag = 'input window, operand 0']
    #allocation5 [shape = 's32[2]{0}', space=sflag, size = 0x8, scoped, tag = 'scoped memory for tpu_custom_call.1']
    #allocation6 [shape = 's32[2]{0}', space=sflag, size = 0x8, scoped, tag = 'scoped memory for tpu_custom_call.1']
    #allocation7 [shape = 'u8[16384]{0}', space=vmem, size = 0x4000, scoped, tag = 'output window, operand 0']
    %8 = vsyncpa [#allocation5], 0
    %s9 = scalar_lea.sflag [#allocation5], 1
    %10 = vsyncpa %s9, 0
    %11 = vsyncpa [#allocation6], 0
    %s12 = scalar_lea.sflag [#allocation6], 1
    %13 = vsyncpa %s12, 0
    loop: start=0, step=1, limit=4
    $region2: #{tpu_custom_call.1} parent=1 // loop_pre_header
      _
    $region3: #{tpu_custom_call.1} parent=1 // loop_header
      %s15 = sphi 0, %s19
      %p16 = scmp.ge.s32.totalorder %s15, 4
      %s25 = sphi 0, %s27
      %s28 = sphi 0, %s25
      %s29 = sphi 0, %s28
      %s45 = sphi 0, %s29
      %s49 = sphi 0, %s49
      %s51 = sphi 0, %s49
      %s52 = sphi 0, %s51
      %s66 = sphi 0, %s52
      %s70 = sphi 0, %s70
      %s72 = sphi 0, %s70
      %s73 = sphi 0, %s72
      %s87 = sphi 0, %s73
      %s93 = sphi 0, %s95
      %s96 = sphi 0, %s93
      %s97 = sphi 0, %s96
      %s113 = sphi 0, %s97
    $region4: #{tpu_custom_call.1} parent=1 // loop_header_branch
      %18 = sbr.rel (%p16) target = $region8
    $region5: #{tpu_custom_call.1} parent=1 // loop_body
      %s20 = ssub.s32 %s15, 1
      %s21 = ssub.s32 %s15, 2
      %s22 = sadd.s32 %s15, 1
      %s23 = ssub.s32 %s15, %s22
      %p24 = scmp.eq.s32.totalorder %s23, 0
      %s26 = sadd.s32 %s25, 1
      %s27 = scalar_select %p24, %s25, %s26
      %p30 = pneg %p24
      %p31 = scmp.eq.s32.totalorder %s15, 1
      %p32 = por %p30, %p31
      %p33 = scmp.ne.s32.totalorder %s25, %s28
      %p34 = scmp.eq.s32.totalorder %s15, 0
      %p35 = por %p33, %p34
      %p36 = scmp.ne.s32.totalorder %s25, %s28
      %p37 = scmp.eq.s32.totalorder %s20, 1
      %p38 = por %p36, %p37
      %p39 = scmp.ne.s32.totalorder %s28, %s29
      %p40 = scmp.eq.s32.totalorder %s20, 0
      %p41 = por %p39, %p40
      %p42 = scmp.ne.s32.totalorder %s28, %s29
      %p43 = scmp.eq.s32.totalorder %s21, 1
      %p44 = por %p42, %p43
      %p46 = scmp.ne.s32.totalorder %s29, %s45
      %p47 = scmp.eq.s32.totalorder %s21, 0
      %p48 = por %p46, %p47
      %s50 = sadd.s32 %s49, 1
      %p53 = scmp.eq.s32.totalorder %s15, 1
      %p54 = scmp.ne.s32.totalorder %s49, %s51
      %p55 = scmp.eq.s32.totalorder %s15, 0
      %p56 = por %p54, %p55
      %p57 = scmp.ne.s32.totalorder %s49, %s51
      %p58 = scmp.eq.s32.totalorder %s20, 1
      %p59 = por %p57, %p58
      %p60 = scmp.ne.s32.totalorder %s51, %s52
      %p61 = scmp.eq.s32.totalorder %s20, 0
      %p62 = por %p60, %p61
      %p63 = scmp.ne.s32.totalorder %s51, %s52
      %p64 = scmp.eq.s32.totalorder %s21, 1
      %p65 = por %p63, %p64
      %p67 = scmp.ne.s32.totalorder %s52, %s66
      %p68 = scmp.eq.s32.totalorder %s21, 0
      %p69 = por %p67, %p68
      %s71 = sadd.s32 %s70, 1
      %p74 = scmp.eq.s32.totalorder %s15, 1
      %p75 = scmp.ne.s32.totalorder %s70, %s72
      %p76 = scmp.eq.s32.totalorder %s15, 0
      %p77 = por %p75, %p76
      %p78 = scmp.ne.s32.totalorder %s70, %s72
      %p79 = scmp.eq.s32.totalorder %s20, 1
      %p80 = por %p78, %p79
      %p81 = scmp.ne.s32.totalorder %s72, %s73
      %p82 = scmp.eq.s32.totalorder %s20, 0
      %p83 = por %p81, %p82
      %p84 = scmp.ne.s32.totalorder %s72, %s73
      %p85 = scmp.eq.s32.totalorder %s21, 1
      %p86 = por %p84, %p85
      %p88 = scmp.ne.s32.totalorder %s73, %s87
      %p89 = scmp.eq.s32.totalorder %s21, 0
      %p90 = por %p88, %p89
      %s91 = ssub.s32 %s15, %s22
      %p92 = scmp.eq.s32.totalorder %s91, 0
      %s94 = sadd.s32 %s93, 1
      %s95 = scalar_select %p92, %s93, %s94
      %p98 = pneg %p92
      %p99 = scmp.eq.s32.totalorder %s15, 1
      %p100 = por %p98, %p99
      %p101 = scmp.ne.s32.totalorder %s93, %s96
      %p102 = scmp.eq.s32.totalorder %s15, 0
      %p103 = por %p101, %p102
      %p104 = scmp.ne.s32.totalorder %s93, %s96
      %p105 = scmp.eq.s32.totalorder %s20, 1
      %p106 = por %p104, %p105
      %p107 = scmp.ne.s32.totalorder %s96, %s97
      %p108 = scmp.eq.s32.totalorder %s20, 0
      %p109 = por %p107, %p108
      %p110 = scmp.ne.s32.totalorder %s96, %s97
      %p111 = scmp.eq.s32.totalorder %s21, 1
      %p112 = por %p110, %p111
      %p114 = scmp.ne.s32.totalorder %s97, %s113
      %p115 = scmp.eq.s32.totalorder %s21, 0
      %p116 = por %p114, %p115
      %p117 = scmp.le.s32.totalorder 1, %s15
      %p118 = scmp.lt.s32.totalorder %s15, 3
      %p119 = pnand %p117, %p118
      %p120 = pneg %p119
      // Predicated region
      $region9: #{tpu_custom_call.1} parent=5 // pred_check
        _
      $region10: #{tpu_custom_call.1} parent=5 // pred_check_branch
        %122 = sbr.rel (%p119) target = $region12
      $region11: #{tpu_custom_call.1} parent=5 // pred_region
        %s123 = ssub.s32 %s15, 1
        // Predicated region
        $region13: #{tpu_custom_call.1} parent=11 // pred_check
          %p124 = pneg %p62
        $region14: #{tpu_custom_call.1} parent=11 // pred_check_branch
          %126 = sbr.rel (%p124) target = $region16
        $region15: #{tpu_custom_call.1} parent=11 // pred_region
          _
        $region16: #{tpu_custom_call.1} parent=11 // pred_fallthru
          _
        // Predicated region
        $region17: #{tpu_custom_call.1} parent=11 // pred_check
          %p127 = pneg %p83
        $region18: #{tpu_custom_call.1} parent=11 // pred_check_branch
          %129 = sbr.rel (%p127) target = $region20
        $region19: #{tpu_custom_call.1} parent=11 // pred_region
          _
        $region20: #{tpu_custom_call.1} parent=11 // pred_fallthru
          _
      $region12: #{tpu_custom_call.1} parent=5 // pred_fallthru
        _
      %p130 = scmp.lt.s32.totalorder %s15, 2
      // Predicated region
      $region21: #{tpu_custom_call.1} parent=5 // pred_check
        %p131 = pneg %p130
      $region22: #{tpu_custom_call.1} parent=5 // pred_check_branch
        %133 = sbr.rel (%p131) target = $region24
      $region23: #{tpu_custom_call.1} parent=5 // pred_region
        // Predicated region
        $region25: #{tpu_custom_call.1} parent=23 // pred_check
          %p134 = pneg %p35
        $region26: #{tpu_custom_call.1} parent=23 // pred_check_branch
          %136 = sbr.rel (%p134) target = $region28
        $region27: #{tpu_custom_call.1} parent=23 // pred_region
          %s137 = sand.u32 %s25, 1
          %s138 = scalar_lea.sflag [#allocation5], %s137
          %s139 = sand.u32 %s25, 1
          %s140 = smul.addr %s139, 64
          %s141 = scalar_lea.vmem [#allocation4], %s140
          %143 = vsyncadd %s138, 0
          %s144 = smul.addr %s15, 8
          %s145 = smul.addr %s144, 8
          %s146 = scalar_lea.hbm %s0, %s145
          %s147 = sshll.u32 %s146, 4
          %s148 = int_to_ptr.hbm [resolvable:$true] %s147
          %s149 = sshll.u32 %s141, 4
          %s150 = int_to_ptr.vmem [resolvable:$true] %s149
          %155 = dma.hbm_to_vmem [thread:$0]  %s148, 1024, %s150, %s138, 128, 128, 8
        $region28: #{tpu_custom_call.1} parent=23 // pred_fallthru
          _
      $region24: #{tpu_custom_call.1} parent=5 // pred_fallthru
        _
      %p156 = scmp.le.s32.totalorder 1, %s15
      %p157 = scmp.lt.s32.totalorder %s15, 3
      %p158 = pnand %p156, %p157
      %p159 = pneg %p158
      // Predicated region
      $region29: #{tpu_custom_call.1} parent=5 // pred_check
        _
      $region30: #{tpu_custom_call.1} parent=5 // pred_check_branch
        %161 = sbr.rel (%p158) target = $region32
      $region31: #{tpu_custom_call.1} parent=5 // pred_region
        %s162 = ssub.s32 %s15, 1
        %s163 = sand.u32 %s28, 1
        %s164 = scalar_lea.sflag [#allocation5], %s163
        %s165 = sand.u32 %s28, 1
        %s166 = smul.addr %s165, 64
        %s167 = scalar_lea.vmem [#allocation4], %s166
        // Predicated region
        $region33: #{tpu_custom_call.1} parent=31 // pred_check
          %p168 = pneg %p41
        $region34: #{tpu_custom_call.1} parent=31 // pred_check_branch
          %170 = sbr.rel (%p168) target = $region36
        $region35: #{tpu_custom_call.1} parent=31 // pred_region
          %172 = dma.done %s164, 1024
        $region36: #{tpu_custom_call.1} parent=31 // pred_fallthru
          _
        %s173 = sand.u32 %s28, 1
        %s174 = scalar_lea.sflag [#allocation5], %s173
        %s175 = sand.u32 %s28, 1
        %s176 = smul.addr %s175, 64
        %s177 = scalar_lea.vmem [#allocation4], %s176
        %p178 = pneg %p41
        %p179 = pneg %p38
        %p180 = pneg %p62
        %p181 = pneg %p59
        %p182 = pneg %p83
        %p183 = pneg %p80
        %p184 = pneg %p109
        %p185 = pneg %p106
        %s186 = sand.u32 %s96, 1
        %s187 = scalar_lea.sflag [#allocation6], %s186
        %s188 = sand.u32 %s96, 1
        %s189 = smul.addr %s188, 16
        %s190 = scalar_lea.vmem [#allocation7], %s189
        %v191 = vld [vmem:[%s167] sm:$0xff]
        %v192 = vld [vmem:[%s167 + $0x8] sm:$0xff]
        %v193 = vld [vmem:[%s167 + $0x10] sm:$0xff]
        %v194 = vld [vmem:[%s167 + $0x18] sm:$0xff]
        %v195 = vld [vmem:[%s167 + $0x20] sm:$0xff]
        %v196 = vld [vmem:[%s167 + $0x28] sm:$0xff]
        %v197 = vld [vmem:[%s167 + $0x30] sm:$0xff]
        %v198 = vld [vmem:[%s167 + $0x38] sm:$0xff]
        %207 = vrot.lane.b32.xlu0 %v191, 1
        %v208 = vpop.permute.xlu0 %207
        %209 = vrot.lane.b32.xlu0 %v192, 1
        %v210 = vpop.permute.xlu0 %209
        %211 = vrot.lane.b32.xlu0 %v193, 1
        %v212 = vpop.permute.xlu0 %211
        %213 = vrot.lane.b32.xlu0 %v194, 1
        %v214 = vpop.permute.xlu0 %213
        %215 = vrot.lane.b32.xlu0 %v195, 1
        %v216 = vpop.permute.xlu0 %215
        %217 = vrot.lane.b32.xlu0 %v196, 1
        %v218 = vpop.permute.xlu0 %217
        %219 = vrot.lane.b32.xlu0 %v197, 1
        %v220 = vpop.permute.xlu0 %219
        %221 = vrot.lane.b32.xlu0 %v198, 1
        %v222 = vpop.permute.xlu0 %221
        %vm231 = vcmask 138248
        %232 = vst.msk [vmem:[#allocation2] sm:$0xff] %vm231, %v208
        %233 = vst.msk [vmem:[#allocation2 + $0x8] sm:$0xff] %vm231, %v210
        %234 = vst.msk [vmem:[#allocation2 + $0x10] sm:$0xff] %vm231, %v212
        %235 = vst.msk [vmem:[#allocation2 + $0x18] sm:$0xff] %vm231, %v214
        %236 = vst.msk [vmem:[#allocation2 + $0x20] sm:$0xff] %vm231, %v216
        %237 = vst.msk [vmem:[#allocation2 + $0x28] sm:$0xff] %vm231, %v218
        %238 = vst.msk [vmem:[#allocation2 + $0x30] sm:$0xff] %vm231, %v220
        %239 = vst.msk [vmem:[#allocation2 + $0x38] sm:$0xff] %vm231, %v222
        %vm240 = vcmask 7168
        %241 = vst.msk [vmem:[#allocation2] sm:$0xff] %vm240, 0.0
        %242 = vst.msk [vmem:[#allocation2 + $0x8] sm:$0xff] %vm240, 0.0
        %243 = vst.msk [vmem:[#allocation2 + $0x10] sm:$0xff] %vm240, 0.0
        %244 = vst.msk [vmem:[#allocation2 + $0x18] sm:$0xff] %vm240, 0.0
        %245 = vst.msk [vmem:[#allocation2 + $0x20] sm:$0xff] %vm240, 0.0
        %246 = vst.msk [vmem:[#allocation2 + $0x28] sm:$0xff] %vm240, 0.0
        %247 = vst.msk [vmem:[#allocation2 + $0x30] sm:$0xff] %vm240, 0.0
        %248 = vst.msk [vmem:[#allocation2 + $0x38] sm:$0xff] %vm240, 0.0
        %vm249 = vcmask 154760
        %250 = vst.msk [vmem:[#allocation2] sm:$0xff] %vm249, 0.0
        %251 = vst.msk [vmem:[#allocation2 + $0x8] sm:$0xff] %vm249, 0.0
        %252 = vst.msk [vmem:[#allocation2 + $0x10] sm:$0xff] %vm249, 0.0
        %253 = vst.msk [vmem:[#allocation2 + $0x18] sm:$0xff] %vm249, 0.0
        %254 = vst.msk [vmem:[#allocation2 + $0x20] sm:$0xff] %vm249, 0.0
        %255 = vst.msk [vmem:[#allocation2 + $0x28] sm:$0xff] %vm249, 0.0
        %256 = vst.msk [vmem:[#allocation2 + $0x30] sm:$0xff] %vm249, 0.0
        %257 = vst.msk [vmem:[#allocation2 + $0x38] sm:$0xff] %vm249, 0.0
        %v258 = vld [vmem:[#allocation2] sm:$0xff]
        %v259 = vld [vmem:[#allocation2 + $0x8] sm:$0xff]
        %v260 = vld [vmem:[#allocation2 + $0x10] sm:$0xff]
        %v261 = vld [vmem:[#allocation2 + $0x18] sm:$0xff]
        %v262 = vld [vmem:[#allocation2 + $0x20] sm:$0xff]
        %v263 = vld [vmem:[#allocation2 + $0x28] sm:$0xff]
        %v264 = vld [vmem:[#allocation2 + $0x30] sm:$0xff]
        %v265 = vld [vmem:[#allocation2 + $0x38] sm:$0xff]
        %v266 = vrot.slane %v262, 4
        %vm267 = vcmask 1047556
        %v268 = vsel %vm267, %v266, %v258
        %v269 = vrot.slane %v258, 4
        %v270 = vsel %vm267, %v262, %v269
        %v272 = vunpack.c.l.s4 1983009808
        %v273 = vunpack.c.0.s8 %v272
        %v274 = vperm.slane %v268, %v273
        %v276 = vunpack.c.l.s4 1983009808
        %v277 = vunpack.c.0.s8 %v276
        %v278 = vperm.slane %v270, %v277
        %v279 = vrot.slane %v264, 4
        %v280 = vsel %vm267, %v279, %v260
        %v281 = vrot.slane %v260, 4
        %v282 = vsel %vm267, %v264, %v281
        %v284 = vunpack.c.l.s4 1983009808
        %v285 = vunpack.c.0.s8 %v284
        %v286 = vperm.slane %v280, %v285
        %v288 = vunpack.c.l.s4 1983009808
        %v289 = vunpack.c.0.s8 %v288
        %v290 = vperm.slane %v282, %v289
        %v291 = vrot.slane %v286, 4
        %v292 = vsel %vm267, %v291, %v274
        %v293 = vrot.slane %v274, 4
        %v294 = vsel %vm267, %v286, %v293
        %v296 = vunpack.c.l.s4 1934713408
        %v297 = vunpack.c.0.s8 %v296
        %v298 = vperm.slane %v292, %v297
        %v300 = vunpack.c.l.s4 1934713408
        %v301 = vunpack.c.0.s8 %v300
        %v302 = vperm.slane %v294, %v301
        %v303 = vrot.slane %v290, 4
        %v304 = vsel %vm267, %v303, %v278
        %v305 = vrot.slane %v278, 4
        %v306 = vsel %vm267, %v290, %v305
        %v308 = vunpack.c.l.s4 1934713408
        %v309 = vunpack.c.0.s8 %v308
        %v310 = vperm.slane %v304, %v309
        %v312 = vunpack.c.l.s4 1934713408
        %v313 = vunpack.c.0.s8 %v312
        %v314 = vperm.slane %v306, %v313
        %v315 = vrot.slane %v298, 4
        %v316 = vsel %vm267, 0.0, %v315
        %v317 = vrot.slane %v302, 4
        %v318 = vsel %vm267, 0.0, %v317
        %v319 = vrot.slane %v310, 4
        %v320 = vsel %vm267, 0.0, %v319
        %v321 = vrot.slane %v314, 4
        %v322 = vsel %vm267, 0.0, %v321
        %v323 = vrot.slane %v263, 4
        %v324 = vsel %vm267, %v323, %v259
        %v325 = vrot.slane %v259, 4
        %v326 = vsel %vm267, %v263, %v325
        %v328 = vunpack.c.l.s4 1983009808
        %v329 = vunpack.c.0.s8 %v328
        %v330 = vperm.slane %v324, %v329
        %v332 = vunpack.c.l.s4 1983009808
        %v333 = vunpack.c.0.s8 %v332
        %v334 = vperm.slane %v326, %v333
        %v335 = vrot.slane %v265, 4
        %v336 = vsel %vm267, %v335, %v261
        %v337 = vrot.slane %v261, 4
        %v338 = vsel %vm267, %v265, %v337
        %v340 = vunpack.c.l.s4 1983009808
        %v341 = vunpack.c.0.s8 %v340
        %v342 = vperm.slane %v336, %v341
        %v344 = vunpack.c.l.s4 1983009808
        %v345 = vunpack.c.0.s8 %v344
        %v346 = vperm.slane %v338, %v345
        %v347 = vrot.slane %v342, 4
        %v348 = vsel %vm267, %v347, %v330
        %v349 = vrot.slane %v330, 4
        %v350 = vsel %vm267, %v342, %v349
        %v352 = vunpack.c.l.s4 1934713408
        %v353 = vunpack.c.0.s8 %v352
        %v354 = vperm.slane %v348, %v353
        %v356 = vunpack.c.l.s4 1934713408
        %v357 = vunpack.c.0.s8 %v356
        %v358 = vperm.slane %v350, %v357
        %v359 = vrot.slane %v346, 4
        %v360 = vsel %vm267, %v359, %v334
        %v361 = vrot.slane %v334, 4
        %v362 = vsel %vm267, %v346, %v361
        %v364 = vunpack.c.l.s4 1934713408
        %v365 = vunpack.c.0.s8 %v364
        %v366 = vperm.slane %v360, %v365
        %v368 = vunpack.c.l.s4 1934713408
        %v369 = vunpack.c.0.s8 %v368
        %v370 = vperm.slane %v362, %v369
        %v371 = vrot.slane %v354, 4
        %v372 = vsel %vm267, 0.0, %v371
        %v373 = vrot.slane %v358, 4
        %v374 = vsel %vm267, 0.0, %v373
        %v375 = vrot.slane %v366, 4
        %v376 = vsel %vm267, 0.0, %v375
        %v377 = vrot.slane %v370, 4
        %v378 = vsel %vm267, 0.0, %v377
        %380 = vrot.lane.b32.xlu0 %v316, 16
        %v381 = vpop.permute.xlu0 %380
        %384 = vrot.lane.b32.xlu0 %v302, 32
        %v385 = vpop.permute.xlu0 %384
        %388 = vrot.lane.b32.xlu0 %v318, 48
        %v389 = vpop.permute.xlu0 %388
        %392 = vrot.lane.b32.xlu0 %v310, 64
        %v393 = vpop.permute.xlu0 %392
        %396 = vrot.lane.b32.xlu0 %v320, 80
        %v397 = vpop.permute.xlu0 %396
        %400 = vrot.lane.b32.xlu0 %v314, 96
        %v401 = vpop.permute.xlu0 %400
        %404 = vrot.lane.b32.xlu0 %v322, 112
        %v405 = vpop.permute.xlu0 %404
        %408 = vrot.lane.b32.xlu0 %v372, 16
        %v409 = vpop.permute.xlu0 %408
        %412 = vrot.lane.b32.xlu0 %v358, 32
        %v413 = vpop.permute.xlu0 %412
        %416 = vrot.lane.b32.xlu0 %v374, 48
        %v417 = vpop.permute.xlu0 %416
        %420 = vrot.lane.b32.xlu0 %v366, 64
        %v421 = vpop.permute.xlu0 %420
        %424 = vrot.lane.b32.xlu0 %v376, 80
        %v425 = vpop.permute.xlu0 %424
        %428 = vrot.lane.b32.xlu0 %v370, 96
        %v429 = vpop.permute.xlu0 %428
        %432 = vrot.lane.b32.xlu0 %v378, 112
        %v433 = vpop.permute.xlu0 %432
        %vm435 = vcmask 130048
        %v436 = vsel %vm435, %v298, %v381
        %vm437 = vcmask 261120
        %v438 = vsel %vm437, %v436, %v385
        %vm439 = vcmask 392192
        %v440 = vsel %vm439, %v438, %v389
        %vm441 = vcmask 523264
        %v442 = vsel %vm441, %v440, %v393
        %vm443 = vcmask 654336
        %v444 = vsel %vm443, %v442, %v397
        %vm445 = vcmask 785408
        %v446 = vsel %vm445, %v444, %v401
        %vm447 = vcmask 916480
        %v448 = vsel %vm447, %v446, %v405
        %v449 = vsel %vm435, %v354, %v409
        %v450 = vsel %vm437, %v449, %v413
        %v451 = vsel %vm439, %v450, %v417
        %v452 = vsel %vm441, %v451, %v421
        %v453 = vsel %vm443, %v452, %v425
        %v454 = vsel %vm445, %v453, %v429
        %v455 = vsel %vm447, %v454, %v433
        %456 = vst [vmem:[#allocation3] sm:$0xf] %v448
        %457 = vst [vmem:[#allocation3 + $0x8] sm:$0xf] %v455
        %v458 = vld [vmem:[#allocation2] sm:$0xff]
        %v459 = vld [vmem:[#allocation2 + $0x8] sm:$0xff]
        %v460 = vld [vmem:[#allocation2 + $0x10] sm:$0xff]
        %v461 = vld [vmem:[#allocation2 + $0x18] sm:$0xff]
        %v462 = vld [vmem:[#allocation2 + $0x20] sm:$0xff]
        %v463 = vld [vmem:[#allocation2 + $0x28] sm:$0xff]
        %v464 = vld [vmem:[#allocation2 + $0x30] sm:$0xff]
        %v465 = vld [vmem:[#allocation2 + $0x38] sm:$0xff]
        %474 = vrot.lane.b32.xlu0 %v458, 127
        %v475 = vpop.permute.xlu0 %474
        %476 = vrot.lane.b32.xlu0 %v459, 127
        %v477 = vpop.permute.xlu0 %476
        %478 = vrot.lane.b32.xlu0 %v460, 127
        %v479 = vpop.permute.xlu0 %478
        %480 = vrot.lane.b32.xlu0 %v461, 127
        %v481 = vpop.permute.xlu0 %480
        %482 = vrot.lane.b32.xlu0 %v462, 127
        %v483 = vpop.permute.xlu0 %482
        %484 = vrot.lane.b32.xlu0 %v463, 127
        %v485 = vpop.permute.xlu0 %484
        %486 = vrot.lane.b32.xlu0 %v464, 127
        %v487 = vpop.permute.xlu0 %486
        %488 = vrot.lane.b32.xlu0 %v465, 127
        %v489 = vpop.permute.xlu0 %488
        %v498 = vrot.slane %v483, 4
        %v499 = vsel %vm267, %v498, %v475
        %v500 = vrot.slane %v475, 4
        %v501 = vsel %vm267, %v483, %v500
        %v503 = vunpack.c.l.s4 1983009808
        %v504 = vunpack.c.0.s8 %v503
        %v505 = vperm.slane %v499, %v504
        %v507 = vunpack.c.l.s4 1983009808
        %v508 = vunpack.c.0.s8 %v507
        %v509 = vperm.slane %v501, %v508
        %v510 = vrot.slane %v487, 4
        %v511 = vsel %vm267, %v510, %v479
        %v512 = vrot.slane %v479, 4
        %v513 = vsel %vm267, %v487, %v512
        %v515 = vunpack.c.l.s4 1983009808
        %v516 = vunpack.c.0.s8 %v515
        %v517 = vperm.slane %v511, %v516
        %v519 = vunpack.c.l.s4 1983009808
        %v520 = vunpack.c.0.s8 %v519
        %v521 = vperm.slane %v513, %v520
        %v522 = vrot.slane %v517, 4
        %v523 = vsel %vm267, %v522, %v505
        %v524 = vrot.slane %v505, 4
        %v525 = vsel %vm267, %v517, %v524
        %v527 = vunpack.c.l.s4 1934713408
        %v528 = vunpack.c.0.s8 %v527
        %v529 = vperm.slane %v523, %v528
        %v531 = vunpack.c.l.s4 1934713408
        %v532 = vunpack.c.0.s8 %v531
        %v533 = vperm.slane %v525, %v532
        %v534 = vrot.slane %v521, 4
        %v535 = vsel %vm267, %v534, %v509
        %v536 = vrot.slane %v509, 4
        %v537 = vsel %vm267, %v521, %v536
        %v539 = vunpack.c.l.s4 1934713408
        %v540 = vunpack.c.0.s8 %v539
        %v541 = vperm.slane %v535, %v540
        %v543 = vunpack.c.l.s4 1934713408
        %v544 = vunpack.c.0.s8 %v543
        %v545 = vperm.slane %v537, %v544
        %v546 = vrot.slane %v529, 4
        %v547 = vsel %vm267, 0.0, %v546
        %v548 = vrot.slane %v533, 4
        %v549 = vsel %vm267, 0.0, %v548
        %v550 = vrot.slane %v541, 4
        %v551 = vsel %vm267, 0.0, %v550
        %v552 = vrot.slane %v545, 4
        %v553 = vsel %vm267, 0.0, %v552
        %v554 = vrot.slane %v485, 4
        %v555 = vsel %vm267, %v554, %v477
        %v556 = vrot.slane %v477, 4
        %v557 = vsel %vm267, %v485, %v556
        %v559 = vunpack.c.l.s4 1983009808
        %v560 = vunpack.c.0.s8 %v559
        %v561 = vperm.slane %v555, %v560
        %v563 = vunpack.c.l.s4 1983009808
        %v564 = vunpack.c.0.s8 %v563
        %v565 = vperm.slane %v557, %v564
        %v566 = vrot.slane %v489, 4
        %v567 = vsel %vm267, %v566, %v481
        %v568 = vrot.slane %v481, 4
        %v569 = vsel %vm267, %v489, %v568
        %v571 = vunpack.c.l.s4 1983009808
        %v572 = vunpack.c.0.s8 %v571
        %v573 = vperm.slane %v567, %v572
        %v575 = vunpack.c.l.s4 1983009808
        %v576 = vunpack.c.0.s8 %v575
        %v577 = vperm.slane %v569, %v576
        %v578 = vrot.slane %v573, 4
        %v579 = vsel %vm267, %v578, %v561
        %v580 = vrot.slane %v561, 4
        %v581 = vsel %vm267, %v573, %v580
        %v583 = vunpack.c.l.s4 1934713408
        %v584 = vunpack.c.0.s8 %v583
        %v585 = vperm.slane %v579, %v584
        %v587 = vunpack.c.l.s4 1934713408
        %v588 = vunpack.c.0.s8 %v587
        %v589 = vperm.slane %v581, %v588
        %v590 = vrot.slane %v577, 4
        %v591 = vsel %vm267, %v590, %v565
        %v592 = vrot.slane %v565, 4
        %v593 = vsel %vm267, %v577, %v592
        %v595 = vunpack.c.l.s4 1934713408
        %v596 = vunpack.c.0.s8 %v595
        %v597 = vperm.slane %v591, %v596
        %v599 = vunpack.c.l.s4 1934713408
        %v600 = vunpack.c.0.s8 %v599
        %v601 = vperm.slane %v593, %v600
        %v602 = vrot.slane %v585, 4
        %v603 = vsel %vm267, 0.0, %v602
        %v604 = vrot.slane %v589, 4
        %v605 = vsel %vm267, 0.0, %v604
        %v606 = vrot.slane %v597, 4
        %v607 = vsel %vm267, 0.0, %v606
        %v608 = vrot.slane %v601, 4
        %v609 = vsel %vm267, 0.0, %v608
        %611 = vrot.lane.b32.xlu0 %v547, 16
        %v612 = vpop.permute.xlu0 %611
        %615 = vrot.lane.b32.xlu0 %v533, 32
        %v616 = vpop.permute.xlu0 %615
        %619 = vrot.lane.b32.xlu0 %v549, 48
        %v620 = vpop.permute.xlu0 %619
        %623 = vrot.lane.b32.xlu0 %v541, 64
        %v624 = vpop.permute.xlu0 %623
        %627 = vrot.lane.b32.xlu0 %v551, 80
        %v628 = vpop.permute.xlu0 %627
        %631 = vrot.lane.b32.xlu0 %v545, 96
        %v632 = vpop.permute.xlu0 %631
        %635 = vrot.lane.b32.xlu0 %v553, 112
        %v636 = vpop.permute.xlu0 %635
        %639 = vrot.lane.b32.xlu0 %v603, 16
        %v640 = vpop.permute.xlu0 %639
        %643 = vrot.lane.b32.xlu0 %v589, 32
        %v644 = vpop.permute.xlu0 %643
        %647 = vrot.lane.b32.xlu0 %v605, 48
        %v648 = vpop.permute.xlu0 %647
        %651 = vrot.lane.b32.xlu0 %v597, 64
        %v652 = vpop.permute.xlu0 %651
        %655 = vrot.lane.b32.xlu0 %v607, 80
        %v656 = vpop.permute.xlu0 %655
        %659 = vrot.lane.b32.xlu0 %v601, 96
        %v660 = vpop.permute.xlu0 %659
        %663 = vrot.lane.b32.xlu0 %v609, 112
        %v664 = vpop.permute.xlu0 %663
        %v666 = vsel %vm435, %v529, %v612
        %v667 = vsel %vm437, %v666, %v616
        %v668 = vsel %vm439, %v667, %v620
        %v669 = vsel %vm441, %v668, %v624
        %v670 = vsel %vm443, %v669, %v628
        %v671 = vsel %vm445, %v670, %v632
        %v672 = vsel %vm447, %v671, %v636
        %v673 = vsel %vm435, %v585, %v640
        %v674 = vsel %vm437, %v673, %v644
        %v675 = vsel %vm439, %v674, %v648
        %v676 = vsel %vm441, %v675, %v652
        %v677 = vsel %vm443, %v676, %v656
        %v678 = vsel %vm445, %v677, %v660
        %v679 = vsel %vm447, %v678, %v664
        %v682 = vrot.slane %v672, 4
        %v683 = vrot.slane %v679, 4
        %686 = vst [vmem:[#allocation3] sm:$0xf0] %v682
        %687 = vst [vmem:[#allocation3 + $0x8] sm:$0xf0] %v683
        %v688 = vld [vmem:[#allocation2] sm:$0xff]
        %v689 = vld [vmem:[#allocation2 + $0x8] sm:$0xff]
        %v690 = vld [vmem:[#allocation2 + $0x10] sm:$0xff]
        %v691 = vld [vmem:[#allocation2 + $0x18] sm:$0xff]
        %v692 = vld [vmem:[#allocation2 + $0x20] sm:$0xff]
        %v693 = vld [vmem:[#allocation2 + $0x28] sm:$0xff]
        %v694 = vld [vmem:[#allocation2 + $0x30] sm:$0xff]
        %v695 = vld [vmem:[#allocation2 + $0x38] sm:$0xff]
        %704 = vrot.lane.b32.xlu0 %v688, 126
        %v705 = vpop.permute.xlu0 %704
        %706 = vrot.lane.b32.xlu0 %v689, 126
        %v707 = vpop.permute.xlu0 %706
        %708 = vrot.lane.b32.xlu0 %v690, 126
        %v709 = vpop.permute.xlu0 %708
        %710 = vrot.lane.b32.xlu0 %v691, 126
        %v711 = vpop.permute.xlu0 %710
        %712 = vrot.lane.b32.xlu0 %v692, 126
        %v713 = vpop.permute.xlu0 %712
        %714 = vrot.lane.b32.xlu0 %v693, 126
        %v715 = vpop.permute.xlu0 %714
        %716 = vrot.lane.b32.xlu0 %v694, 126
        %v717 = vpop.permute.xlu0 %716
        %718 = vrot.lane.b32.xlu0 %v695, 126
        %v719 = vpop.permute.xlu0 %718
        %v728 = vrot.slane %v713, 4
        %v729 = vsel %vm267, %v728, %v705
        %v730 = vrot.slane %v705, 4
        %v731 = vsel %vm267, %v713, %v730
        %v733 = vunpack.c.l.s4 1983009808
        %v734 = vunpack.c.0.s8 %v733
        %v735 = vperm.slane %v729, %v734
        %v737 = vunpack.c.l.s4 1983009808
        %v738 = vunpack.c.0.s8 %v737
        %v739 = vperm.slane %v731, %v738
        %v740 = vrot.slane %v717, 4
        %v741 = vsel %vm267, %v740, %v709
        %v742 = vrot.slane %v709, 4
        %v743 = vsel %vm267, %v717, %v742
        %v745 = vunpack.c.l.s4 1983009808
        %v746 = vunpack.c.0.s8 %v745
        %v747 = vperm.slane %v741, %v746
        %v749 = vunpack.c.l.s4 1983009808
        %v750 = vunpack.c.0.s8 %v749
        %v751 = vperm.slane %v743, %v750
        %v752 = vrot.slane %v747, 4
        %v753 = vsel %vm267, %v752, %v735
        %v754 = vrot.slane %v735, 4
        %v755 = vsel %vm267, %v747, %v754
        %v757 = vunpack.c.l.s4 1934713408
        %v758 = vunpack.c.0.s8 %v757
        %v759 = vperm.slane %v753, %v758
        %v761 = vunpack.c.l.s4 1934713408
        %v762 = vunpack.c.0.s8 %v761
        %v763 = vperm.slane %v755, %v762
        %v764 = vrot.slane %v751, 4
        %v765 = vsel %vm267, %v764, %v739
        %v766 = vrot.slane %v739, 4
        %v767 = vsel %vm267, %v751, %v766
        %v769 = vunpack.c.l.s4 1934713408
        %v770 = vunpack.c.0.s8 %v769
        %v771 = vperm.slane %v765, %v770
        %v773 = vunpack.c.l.s4 1934713408
        %v774 = vunpack.c.0.s8 %v773
        %v775 = vperm.slane %v767, %v774
        %v776 = vrot.slane %v759, 4
        %v777 = vsel %vm267, 0.0, %v776
        %v778 = vrot.slane %v763, 4
        %v779 = vsel %vm267, 0.0, %v778
        %v780 = vrot.slane %v771, 4
        %v781 = vsel %vm267, 0.0, %v780
        %v782 = vrot.slane %v775, 4
        %v783 = vsel %vm267, 0.0, %v782
        %v784 = vrot.slane %v715, 4
        %v785 = vsel %vm267, %v784, %v707
        %v786 = vrot.slane %v707, 4
        %v787 = vsel %vm267, %v715, %v786
        %v789 = vunpack.c.l.s4 1983009808
        %v790 = vunpack.c.0.s8 %v789
        %v791 = vperm.slane %v785, %v790
        %v793 = vunpack.c.l.s4 1983009808
        %v794 = vunpack.c.0.s8 %v793
        %v795 = vperm.slane %v787, %v794
        %v796 = vrot.slane %v719, 4
        %v797 = vsel %vm267, %v796, %v711
        %v798 = vrot.slane %v711, 4
        %v799 = vsel %vm267, %v719, %v798
        %v801 = vunpack.c.l.s4 1983009808
        %v802 = vunpack.c.0.s8 %v801
        %v803 = vperm.slane %v797, %v802
        %v805 = vunpack.c.l.s4 1983009808
        %v806 = vunpack.c.0.s8 %v805
        %v807 = vperm.slane %v799, %v806
        %v808 = vrot.slane %v803, 4
        %v809 = vsel %vm267, %v808, %v791
        %v810 = vrot.slane %v791, 4
        %v811 = vsel %vm267, %v803, %v810
        %v813 = vunpack.c.l.s4 1934713408
        %v814 = vunpack.c.0.s8 %v813
        %v815 = vperm.slane %v809, %v814
        %v817 = vunpack.c.l.s4 1934713408
        %v818 = vunpack.c.0.s8 %v817
        %v819 = vperm.slane %v811, %v818
        %v820 = vrot.slane %v807, 4
        %v821 = vsel %vm267, %v820, %v795
        %v822 = vrot.slane %v795, 4
        %v823 = vsel %vm267, %v807, %v822
        %v825 = vunpack.c.l.s4 1934713408
        %v826 = vunpack.c.0.s8 %v825
        %v827 = vperm.slane %v821, %v826
        %v829 = vunpack.c.l.s4 1934713408
        %v830 = vunpack.c.0.s8 %v829
        %v831 = vperm.slane %v823, %v830
        %v832 = vrot.slane %v815, 4
        %v833 = vsel %vm267, 0.0, %v832
        %v834 = vrot.slane %v819, 4
        %v835 = vsel %vm267, 0.0, %v834
        %v836 = vrot.slane %v827, 4
        %v837 = vsel %vm267, 0.0, %v836
        %v838 = vrot.slane %v831, 4
        %v839 = vsel %vm267, 0.0, %v838
        %841 = vrot.lane.b32.xlu0 %v777, 16
        %v842 = vpop.permute.xlu0 %841
        %845 = vrot.lane.b32.xlu0 %v763, 32
        %v846 = vpop.permute.xlu0 %845
        %849 = vrot.lane.b32.xlu0 %v779, 48
        %v850 = vpop.permute.xlu0 %849
        %853 = vrot.lane.b32.xlu0 %v771, 64
        %v854 = vpop.permute.xlu0 %853
        %857 = vrot.lane.b32.xlu0 %v781, 80
        %v858 = vpop.permute.xlu0 %857
        %861 = vrot.lane.b32.xlu0 %v775, 96
        %v862 = vpop.permute.xlu0 %861
        %865 = vrot.lane.b32.xlu0 %v783, 112
        %v866 = vpop.permute.xlu0 %865
        %869 = vrot.lane.b32.xlu0 %v833, 16
        %v870 = vpop.permute.xlu0 %869
        %873 = vrot.lane.b32.xlu0 %v819, 32
        %v874 = vpop.permute.xlu0 %873
        %877 = vrot.lane.b32.xlu0 %v835, 48
        %v878 = vpop.permute.xlu0 %877
        %881 = vrot.lane.b32.xlu0 %v827, 64
        %v882 = vpop.permute.xlu0 %881
        %885 = vrot.lane.b32.xlu0 %v837, 80
        %v886 = vpop.permute.xlu0 %885
        %889 = vrot.lane.b32.xlu0 %v831, 96
        %v890 = vpop.permute.xlu0 %889
        %893 = vrot.lane.b32.xlu0 %v839, 112
        %v894 = vpop.permute.xlu0 %893
        %v896 = vsel %vm435, %v759, %v842
        %v897 = vsel %vm437, %v896, %v846
        %v898 = vsel %vm439, %v897, %v850
        %v899 = vsel %vm441, %v898, %v854
        %v900 = vsel %vm443, %v899, %v858
        %v901 = vsel %vm445, %v900, %v862
        %v902 = vsel %vm447, %v901, %v866
        %v903 = vsel %vm435, %v815, %v870
        %v904 = vsel %vm437, %v903, %v874
        %v905 = vsel %vm439, %v904, %v878
        %v906 = vsel %vm441, %v905, %v882
        %v907 = vsel %vm443, %v906, %v886
        %v908 = vsel %vm445, %v907, %v890
        %v909 = vsel %vm447, %v908, %v894
        %910 = vst [vmem:[#allocation3 + $0x10] sm:$0xf] %v902
        %911 = vst [vmem:[#allocation3 + $0x18] sm:$0xf] %v909
        %v912 = vld [vmem:[#allocation2] sm:$0xff]
        %v913 = vld [vmem:[#allocation2 + $0x8] sm:$0xff]
        %v914 = vld [vmem:[#allocation2 + $0x10] sm:$0xff]
        %v915 = vld [vmem:[#allocation2 + $0x18] sm:$0xff]
        %v916 = vld [vmem:[#allocation2 + $0x20] sm:$0xff]
        %v917 = vld [vmem:[#allocation2 + $0x28] sm:$0xff]
        %v918 = vld [vmem:[#allocation2 + $0x30] sm:$0xff]
        %v919 = vld [vmem:[#allocation2 + $0x38] sm:$0xff]
        %928 = vrot.lane.b32.xlu0 %v912, 125
        %v929 = vpop.permute.xlu0 %928
        %930 = vrot.lane.b32.xlu0 %v913, 125
        %v931 = vpop.permute.xlu0 %930
        %932 = vrot.lane.b32.xlu0 %v914, 125
        %v933 = vpop.permute.xlu0 %932
        %934 = vrot.lane.b32.xlu0 %v915, 125
        %v935 = vpop.permute.xlu0 %934
        %936 = vrot.lane.b32.xlu0 %v916, 125
        %v937 = vpop.permute.xlu0 %936
        %938 = vrot.lane.b32.xlu0 %v917, 125
        %v939 = vpop.permute.xlu0 %938
        %940 = vrot.lane.b32.xlu0 %v918, 125
        %v941 = vpop.permute.xlu0 %940
        %942 = vrot.lane.b32.xlu0 %v919, 125
        %v943 = vpop.permute.xlu0 %942
        %v952 = vrot.slane %v937, 4
        %v953 = vsel %vm267, %v952, %v929
        %v954 = vrot.slane %v929, 4
        %v955 = vsel %vm267, %v937, %v954
        %v957 = vunpack.c.l.s4 1983009808
        %v958 = vunpack.c.0.s8 %v957
        %v959 = vperm.slane %v953, %v958
        %v961 = vunpack.c.l.s4 1983009808
        %v962 = vunpack.c.0.s8 %v961
        %v963 = vperm.slane %v955, %v962
        %v964 = vrot.slane %v941, 4
        %v965 = vsel %vm267, %v964, %v933
        %v966 = vrot.slane %v933, 4
        %v967 = vsel %vm267, %v941, %v966
        %v969 = vunpack.c.l.s4 1983009808
        %v970 = vunpack.c.0.s8 %v969
        %v971 = vperm.slane %v965, %v970
        %v973 = vunpack.c.l.s4 1983009808
        %v974 = vunpack.c.0.s8 %v973
        %v975 = vperm.slane %v967, %v974
        %v976 = vrot.slane %v971, 4
        %v977 = vsel %vm267, %v976, %v959
        %v978 = vrot.slane %v959, 4
        %v979 = vsel %vm267, %v971, %v978
        %v981 = vunpack.c.l.s4 1934713408
        %v982 = vunpack.c.0.s8 %v981
        %v983 = vperm.slane %v977, %v982
        %v985 = vunpack.c.l.s4 1934713408
        %v986 = vunpack.c.0.s8 %v985
        %v987 = vperm.slane %v979, %v986
        %v988 = vrot.slane %v975, 4
        %v989 = vsel %vm267, %v988, %v963
        %v990 = vrot.slane %v963, 4
        %v991 = vsel %vm267, %v975, %v990
        %v993 = vunpack.c.l.s4 1934713408
        %v994 = vunpack.c.0.s8 %v993
        %v995 = vperm.slane %v989, %v994
        %v997 = vunpack.c.l.s4 1934713408
        %v998 = vunpack.c.0.s8 %v997
        %v999 = vperm.slane %v991, %v998
        %v1000 = vrot.slane %v983, 4
        %v1001 = vsel %vm267, 0.0, %v1000
        %v1002 = vrot.slane %v987, 4
        %v1003 = vsel %vm267, 0.0, %v1002
        %v1004 = vrot.slane %v995, 4
        %v1005 = vsel %vm267, 0.0, %v1004
        %v1006 = vrot.slane %v999, 4
        %v1007 = vsel %vm267, 0.0, %v1006
        %v1008 = vrot.slane %v939, 4
        %v1009 = vsel %vm267, %v1008, %v931
        %v1010 = vrot.slane %v931, 4
        %v1011 = vsel %vm267, %v939, %v1010
        %v1013 = vunpack.c.l.s4 1983009808
        %v1014 = vunpack.c.0.s8 %v1013
        %v1015 = vperm.slane %v1009, %v1014
        %v1017 = vunpack.c.l.s4 1983009808
        %v1018 = vunpack.c.0.s8 %v1017
        %v1019 = vperm.slane %v1011, %v1018
        %v1020 = vrot.slane %v943, 4
        %v1021 = vsel %vm267, %v1020, %v935
        %v1022 = vrot.slane %v935, 4
        %v1023 = vsel %vm267, %v943, %v1022
        %v1025 = vunpack.c.l.s4 1983009808
        %v1026 = vunpack.c.0.s8 %v1025
        %v1027 = vperm.slane %v1021, %v1026
        %v1029 = vunpack.c.l.s4 1983009808
        %v1030 = vunpack.c.0.s8 %v1029
        %v1031 = vperm.slane %v1023, %v1030
        %v1032 = vrot.slane %v1027, 4
        %v1033 = vsel %vm267, %v1032, %v1015
        %v1034 = vrot.slane %v1015, 4
        %v1035 = vsel %vm267, %v1027, %v1034
        %v1037 = vunpack.c.l.s4 1934713408
        %v1038 = vunpack.c.0.s8 %v1037
        %v1039 = vperm.slane %v1033, %v1038
        %v1041 = vunpack.c.l.s4 1934713408
        %v1042 = vunpack.c.0.s8 %v1041
        %v1043 = vperm.slane %v1035, %v1042
        %v1044 = vrot.slane %v1031, 4
        %v1045 = vsel %vm267, %v1044, %v1019
        %v1046 = vrot.slane %v1019, 4
        %v1047 = vsel %vm267, %v1031, %v1046
        %v1049 = vunpack.c.l.s4 1934713408
        %v1050 = vunpack.c.0.s8 %v1049
        %v1051 = vperm.slane %v1045, %v1050
        %v1053 = vunpack.c.l.s4 1934713408
        %v1054 = vunpack.c.0.s8 %v1053
        %v1055 = vperm.slane %v1047, %v1054
        %v1056 = vrot.slane %v1039, 4
        %v1057 = vsel %vm267, 0.0, %v1056
        %v1058 = vrot.slane %v1043, 4
        %v1059 = vsel %vm267, 0.0, %v1058
        %v1060 = vrot.slane %v1051, 4
        %v1061 = vsel %vm267, 0.0, %v1060
        %v1062 = vrot.slane %v1055, 4
        %v1063 = vsel %vm267, 0.0, %v1062
        %1065 = vrot.lane.b32.xlu0 %v1001, 16
        %v1066 = vpop.permute.xlu0 %1065
        %1069 = vrot.lane.b32.xlu0 %v987, 32
        %v1070 = vpop.permute.xlu0 %1069
        %1073 = vrot.lane.b32.xlu0 %v1003, 48
        %v1074 = vpop.permute.xlu0 %1073
        %1077 = vrot.lane.b32.xlu0 %v995, 64
        %v1078 = vpop.permute.xlu0 %1077
        %1081 = vrot.lane.b32.xlu0 %v1005, 80
        %v1082 = vpop.permute.xlu0 %1081
        %1085 = vrot.lane.b32.xlu0 %v999, 96
        %v1086 = vpop.permute.xlu0 %1085
        %1089 = vrot.lane.b32.xlu0 %v1007, 112
        %v1090 = vpop.permute.xlu0 %1089
        %1093 = vrot.lane.b32.xlu0 %v1057, 16
        %v1094 = vpop.permute.xlu0 %1093
        %1097 = vrot.lane.b32.xlu0 %v1043, 32
        %v1098 = vpop.permute.xlu0 %1097
        %1101 = vrot.lane.b32.xlu0 %v1059, 48
        %v1102 = vpop.permute.xlu0 %1101
        %1105 = vrot.lane.b32.xlu0 %v1051, 64
        %v1106 = vpop.permute.xlu0 %1105
        %1109 = vrot.lane.b32.xlu0 %v1061, 80
        %v1110 = vpop.permute.xlu0 %1109
        %1113 = vrot.lane.b32.xlu0 %v1055, 96
        %v1114 = vpop.permute.xlu0 %1113
        %1117 = vrot.lane.b32.xlu0 %v1063, 112
        %v1118 = vpop.permute.xlu0 %1117
        %v1120 = vsel %vm435, %v983, %v1066
        %v1121 = vsel %vm437, %v1120, %v1070
        %v1122 = vsel %vm439, %v1121, %v1074
        %v1123 = vsel %vm441, %v1122, %v1078
        %v1124 = vsel %vm443, %v1123, %v1082
        %v1125 = vsel %vm445, %v1124, %v1086
        %v1126 = vsel %vm447, %v1125, %v1090
        %v1127 = vsel %vm435, %v1039, %v1094
        %v1128 = vsel %vm437, %v1127, %v1098
        %v1129 = vsel %vm439, %v1128, %v1102
        %v1130 = vsel %vm441, %v1129, %v1106
        %v1131 = vsel %vm443, %v1130, %v1110
        %v1132 = vsel %vm445, %v1131, %v1114
        %v1133 = vsel %vm447, %v1132, %v1118
        %v1136 = vrot.slane %v1126, 4
        %v1137 = vrot.slane %v1133, 4
        %1140 = vst [vmem:[#allocation3 + $0x10] sm:$0xf0] %v1136
        %1141 = vst [vmem:[#allocation3 + $0x18] sm:$0xf0] %v1137
        %v1142 = vld [vmem:[%s1] sm:$0xff]
        %v1143 = vld [vmem:[#allocation3] sm:$0xff]
        %v1144 = vld [vmem:[#allocation3 + $0x8] sm:$0xff]
        %v1145 = vld [vmem:[#allocation3 + $0x10] sm:$0xff]
        %v1146 = vld [vmem:[#allocation3 + $0x18] sm:$0xff]
        %v1147 = vld [vmem:[%s2] sm:$0xff]
        %1149 = vset.pattern.permute.xlu0 0
        %1150 = vperm.xlu0 %1149, %v1147
        %v1151 = vpop.permute.xlu0 %1150
        %v1154 = vsel %vm435, %v1142, 0
        %1156 = vmatpush.msra.mxu0 0.0
        %1157 = vmatpush.msra.mxu0 0.0
        %1158 = vmatpush.msra.mxu0 0.0
        %1159 = vmatpush.msra.mxu0 0.0
        %1160 = vmatpush.msra.mxu0 0.0
        %1161 = vmatpush.msra.mxu0 0.0
        %1162 = vmatpush.msra.mxu0 0.0
        %1163 = vmatpush.msra.mxu0 0.0
        %1164 = vmatpush.msra.mxu0 0.0
        %1165 = vmatpush.msra.mxu0 0.0
        %1166 = vmatpush.msra.mxu0 0.0
        %1167 = vmatpush.msra.mxu0 0.0
        %1168 = vmatpush.msra.mxu0 0.0
        %1169 = vmatpush.msra.mxu0 0.0
        %1170 = vmatpush.msra.mxu0 %v1145
        %1171 = vmatpush.msra.mxu0 %v1143
        %1172 = vmatmul.f32.gmra.mxu0 %v1154
        %v1173 = vpop.f32.mrf.mxu0
        %v1174 = vadd.f32 %v1151, %v1173
        %1175 = vdwg.mxu0
        %1176 = vmatpush.msra.mxu0 0.0
        %1177 = vmatpush.msra.mxu0 0.0
        %1178 = vmatpush.msra.mxu0 0.0
        %1179 = vmatpush.msra.mxu0 0.0
        %1180 = vmatpush.msra.mxu0 0.0
        %1181 = vmatpush.msra.mxu0 0.0
        %1182 = vmatpush.msra.mxu0 0.0
        %1183 = vmatpush.msra.mxu0 0.0
        %1184 = vmatpush.msra.mxu0 0.0
        %1185 = vmatpush.msra.mxu0 0.0
        %1186 = vmatpush.msra.mxu0 0.0
        %1187 = vmatpush.msra.mxu0 0.0
        %1188 = vmatpush.msra.mxu0 0.0
        %1189 = vmatpush.msra.mxu0 0.0
        %1190 = vmatpush.msra.mxu0 %v1146
        %1191 = vmatpush.msra.mxu0 %v1144
        %1192 = vmatmul.f32.gmra.mxu0 %v1154
        %v1193 = vpop.f32.mrf.mxu0
        %v1194 = vadd.f32 %v1151, %v1193
        %1195 = vdwg.mxu0
        %1196 = vst [vmem:[%s190] sm:$0xff] %v1174
        %1197 = vst [vmem:[%s190 + $0x8] sm:$0xff] %v1194
        %s1198 = sand.u32 %s96, 1
        %s1199 = scalar_lea.sflag [#allocation6], %s1198
        %s1200 = sand.u32 %s96, 1
        %s1201 = smul.addr %s1200, 16
        %s1202 = scalar_lea.vmem [#allocation7], %s1201
        // Predicated region
        $region37: #{tpu_custom_call.1} parent=31 // pred_check
          %p1203 = pneg %p106
        $region38: #{tpu_custom_call.1} parent=31 // pred_check_branch
          %1205 = sbr.rel (%p1203) target = $region40
        $region39: #{tpu_custom_call.1} parent=31 // pred_region
          %1207 = vsyncadd %s1199, 0
          %s1208 = smul.addr %s20, 2
          %s1209 = smul.addr %s1208, 8
          %s1210 = scalar_lea.hbm %s3, %s1209
          %s1212 = sshll.u32 %s1202, 4
          %s1213 = int_to_ptr.vmem [resolvable:$true] %s1212
          %s1214 = sshll.u32 %s1210, 4
          %s1215 = int_to_ptr.hbm [resolvable:$true] %s1214
          %1217 = dma.vmem_to_hbm [thread:$0]  %s1213, 256, %s1215, %s1199
        $region40: #{tpu_custom_call.1} parent=31 // pred_fallthru
          _
      $region32: #{tpu_custom_call.1} parent=5 // pred_fallthru
        _
      %p1218 = scmp.le.s32.totalorder 2, %s15
      // Predicated region
      $region41: #{tpu_custom_call.1} parent=5 // pred_check
        %p1219 = pneg %p1218
      $region42: #{tpu_custom_call.1} parent=5 // pred_check_branch
        %1221 = sbr.rel (%p1219) target = $region44
      $region43: #{tpu_custom_call.1} parent=5 // pred_region
        %s1222 = ssub.s32 %s15, 2
        // Predicated region
        $region45: #{tpu_custom_call.1} parent=43 // pred_check
          %p1223 = pneg %p112
        $region46: #{tpu_custom_call.1} parent=43 // pred_check_branch
          %1225 = sbr.rel (%p1223) target = $region48
        $region47: #{tpu_custom_call.1} parent=43 // pred_region
          %s1226 = sand.u32 %s97, 1
          %s1227 = scalar_lea.sflag [#allocation6], %s1226
          %s1228 = sand.u32 %s97, 1
          %s1229 = smul.addr %s1228, 16
          %s1230 = scalar_lea.vmem [#allocation7], %s1229
          %1232 = dma.done %s1227, 256
        $region48: #{tpu_custom_call.1} parent=43 // pred_fallthru
          _
      $region44: #{tpu_custom_call.1} parent=5 // pred_fallthru
        _
    $region6: #{tpu_custom_call.1} parent=1 // loop_footer
      %s19 = sadd.s32 1, %s15
    $region7: #{tpu_custom_call.1} parent=1 // loop_footer_branch
      %14 = sbr.rel target = $region3
    $region8: #{tpu_custom_call.1} parent=1 // loop_exit
      _
    %1233 = vsyncpa [#allocation5], 1
    %s1234 = scalar_lea.sflag [#allocation5], 1
    %1235 = vsyncpa %s1234, 1
    %1236 = vsyncpa [#allocation6], 1
    %s1237 = scalar_lea.sflag [#allocation6], 1
    %1238 = vsyncpa %s1237, 1

</llo_original>
